<compile_context>
chip_gen: v7x
topology: tpu7x:2x2x1
jax: 0.10.0
libtpu: 0.0.40
codegen_flags: <defaults>
</compile_context>

<pallas_src>
import numpy as np
import jax
import jax.numpy as jnp
from jax.experimental import pallas as pl
from jax.experimental.pallas import tpu as pltpu

NEG_INF = -1e30
LANES = 128
# MXU operand dtype.  Keep f32 at these tiny, latency-bound shapes; on v6e/v7x at scaled N
# set to jnp.bfloat16 (softmax / leaky-relu / exp math stays f32 regardless).
MXU_DTYPE = jnp.float32

_VMEM = pl.BlockSpec(memory_space=pltpu.MemorySpace.VMEM)


def _leaky_relu(x, slope=0.2):
    return jnp.where(x >= 0.0, x, slope * x)


# ------------------------- parameter packing -------------------------
def _pack_params(params):
    """Pack all parameters into one [rows, 128] f32 array.

    Every entry is zero-padded to a multiple of 8 rows and 128 lanes so each static
    p_ref[row_off : row_off + rows, ...] slice inside the kernel starts on an (8,128)
    tile boundary (zero-cost view, no relayout copy).
    Returns (packed_array, {name: row_offset}).
    """
    H = params["att_src1"].shape[1]
    entries = [
        ("w1", params["w1"]),                       # [F, 2H]
        ("att_src1_h0", params["att_src1"][0:1]),   # [1, H]
        ("att_src1_h1", params["att_src1"][1:2]),
        ("att_dst1_h0", params["att_dst1"][0:1]),
        ("att_dst1_h1", params["att_dst1"][1:2]),
        ("b1", params["b1"]),                       # [1, 2H]
        ("w2_h0", params["w2"][:H]),                # [H, H]   (rows consumed by head 0)
        ("w2_h1", params["w2"][H:]),                # [H, H]   (rows consumed by head 1)
        ("att_src2", params["att_src2"]),           # [1, H]
        ("att_dst2", params["att_dst2"]),
        ("b2", params["b2"]),                       # [1, H]
        ("lin1_w", params["lin1_w"]),               # [H, H]
        ("lin1_b", params["lin1_b"]),               # [1, H]
        ("lin2_w", params["lin2_w"]),               # [H, C] -> lane-padded to [H, 128]
        ("lin2_b", params["lin2_b"]),               # [1, C] -> [1, 128]
        ("t_w", params["t_w"].T),                   # stored as [2, 1] column (lane-dense head)
        ("t_b", params["t_b"]),                     # [1, 1]
    ]
    offsets, blocks, row = {}, [], 0
    for name, a in entries:
        a = jnp.asarray(a, jnp.float32)
        a = jnp.pad(a, ((0, (-a.shape[0]) % 8), (0, LANES - a.shape[1])))
        offsets[name] = row
        blocks.append(a)
        row += a.shape[0]
    return jnp.concatenate(blocks, axis=0), offsets


# ------------------------------ kernel ------------------------------
def _build_kernel(F, H, n_edge_feat, o):
    def kernel(x_ref, adj_ref, ea_ref, p_ref, out_ref, ew_ref):
        x = x_ref[...]                                               # [N, F]
        # int8 adjacency -> one in-register convert, then a pure VPU mask.
        edge_mask = adj_ref[...].astype(jnp.float32) > 0.0           # [N_dst, N_src]

        def mm(a, b):
            return jnp.dot(a.astype(MXU_DTYPE), b.astype(MXU_DTYPE),
                           preferred_element_type=jnp.float32)

        def gat_head(z, att_src, att_dst):
            # att_src / att_dst: [1, H] rows of the packed params (8-aligned views).
            a_src = jnp.sum(z * att_src, axis=-1)                    # [N]   per source node
            a_dst = jnp.sum(z * att_dst, axis=-1, keepdims=True)     # [N,1] per dst node
            logits = _leaky_relu(a_dst + a_src[None, :])             # [N, N]
            masked = jnp.where(edge_mask, logits, NEG_INF)
            m = jnp.max(masked, axis=-1, keepdims=True)
            p = jnp.exp(masked - m)        # masked entries underflow to exactly 0.0
            rowsum = jnp.sum(p, axis=-1, keepdims=True)
            # Normalize AFTER the MXU: O(N*H) multiply instead of O(N^2) divide.
            return mm(p, z) * (1.0 / (rowsum + 1e-16))

        # ---------- GATConv 1 (heads=2): heads taken straight from lane slices ----------
        w1 = p_ref[o["w1"]:o["w1"] + F, 0:2 * H]                     # [F, 2H]
        z_all = mm(x, w1)                                            # [N, 2H]
        agg0 = gat_head(z_all[:, :H],
                        p_ref[o["att_src1_h0"]:o["att_src1_h0"] + 1, 0:H],
                        p_ref[o["att_dst1_h0"]:o["att_dst1_h0"] + 1, 0:H])
        agg1 = gat_head(z_all[:, H:2 * H],
                        p_ref[o["att_src1_h1"]:o["att_src1_h1"] + 1, 0:H],
                        p_ref[o["att_dst1_h1"]:o["att_dst1_h1"] + 1, 0:H])
        b1 = p_ref[o["b1"]:o["b1"] + 1, 0:2 * H]
        h1_0 = jnp.maximum(agg0 + b1[:, :H], 0.0)        # ReLU; dropout = eval no-op
        h1_1 = jnp.maximum(agg1 + b1[:, H:2 * H], 0.0)

        # ---------- GATConv 2 (heads=1): concat-free split matmul ----------
        z2 = (mm(h1_0, p_ref[o["w2_h0"]:o["w2_h0"] + H, 0:H]) +
              mm(h1_1, p_ref[o["w2_h1"]:o["w2_h1"] + H, 0:H]))       # [N, H]
        agg2 = gat_head(z2,
                        p_ref[o["att_src2"]:o["att_src2"] + 1, 0:H],
                        p_ref[o["att_dst2"]:o["att_dst2"] + 1, 0:H])
        b2 = p_ref[o["b2"]:o["b2"] + 1, 0:H]
        h2 = jnp.maximum(agg2 + b2, 0.0)                             # [N, H]

        # ---------- MLP head (lane-dense 128-column output slab) ----------
        l1w = p_ref[o["lin1_w"]:o["lin1_w"] + H, 0:H]
        l1b = p_ref[o["lin1_b"]:o["lin1_b"] + 1, 0:H]
        h3 = jnp.maximum(mm(h2, l1w) + l1b, 0.0)
        l2w = p_ref[o["lin2_w"]:o["lin2_w"] + H, :]                  # [H, 128]
        l2b = p_ref[o["lin2_b"]:o["lin2_b"] + 1, :]                  # [1, 128]
        out_ref[...] = mm(h3, l2w) + l2b                             # [N, 128]

        # ---------- fused temporal edge-weight head (edges along lanes) ----------
        ea = ea_ref[...]                                             # [n_ef, E_pad]
        t_w = p_ref[o["t_w"]:o["t_w"] + n_edge_feat, 0:1]            # [n_ef, 1]
        t_b = p_ref[o["t_b"]:o["t_b"] + 1, 0:1]                      # [1, 1]
        logit_e = jnp.sum(ea * t_w, axis=0, keepdims=True) + t_b     # [1, E_pad]
        ew_ref[...] = 1.0 / (1.0 + jnp.exp(-logit_e))

    return kernel


# ----------------------------- wrapper ------------------------------
def temporal_gnn_forward(x, edge_index, edge_attr, params):
    """Returns (logits [N, num_classes], edge_weights [E])."""
    N, F = x.shape
    E, n_ef = edge_attr.shape
    H = params["att_src1"].shape[1]
    C = params["lin2_w"].shape[1]

    # Glue: dense int8 adjacency (dst rows, src cols) with self-loops (PyG add_self_loops=True).
    src, dst = edge_index[0], edge_index[1]
    adj = jnp.zeros((N, N), jnp.int8).at[dst, src].set(1)
    adj = jnp.maximum(adj, jnp.eye(N, dtype=jnp.int8))

    # Lane-dense edge attributes: edges along the 128-lane axis, zero-padded.
    E_pad = ((E + LANES - 1) // LANES) * LANES
    ea_t = jnp.zeros((n_ef, E_pad), jnp.float32).at[:, :E].set(edge_attr.T.astype(jnp.float32))

    packed, offsets = _pack_params(params)
    kernel = _build_kernel(F, H, n_ef, offsets)

    out_pad, ew_pad = pl.pallas_call(
        kernel,
        out_shape=(jax.ShapeDtypeStruct((N, LANES), jnp.float32),    # lane-dense logits slab
                   jax.ShapeDtypeStruct((1, E_pad), jnp.float32)),   # lane-dense edge weights
        in_specs=[_VMEM] * 4,
        out_specs=(_VMEM, _VMEM),
        # 32 MiB is plenty today; at scaled N raise toward ~100 MiB on v5e/v6e and cap ~48 MiB
        # on v7x (64 MiB physical VMEM per TensorCore).
        compiler_params=pltpu.CompilerParams(vmem_limit_bytes=32 * 1024 * 1024),
    )(x, adj, ea_t, packed)
    return out_pad[:, :C], ew_pad[0, :E]


# ---------------- pure-JAX reference (same math, no Pallas) ----------------
def _ref_gat_head(z, att_src, att_dst, adj):
    a_dst = z @ att_dst.T                       # [N, 1]
    a_src = (z @ att_src.T).T                   # [1, N]
    logits = _leaky_relu(a_dst + a_src)
    masked = jnp.where(adj > 0.0, logits, NEG_INF)
    m = jnp.max(masked, axis=1, keepdims=True)
    p = jnp.where(adj > 0.0, jnp.exp(masked - m), 0.0)
    return (p / (jnp.sum(p, axis=1, keepdims=True) + 1e-16)) @ z


def temporal_gnn_reference(x, edge_index, edge_attr, params):
    N = x.shape[0]
    src, dst = edge_index[0], edge_index[1]
    adj = jnp.zeros((N, N), jnp.float32).at[dst, src].set(1.0)
    adj = jnp.maximum(adj, jnp.eye(N, dtype=jnp.float32))
    H = params["att_src1"].shape[1]

    edge_w = jax.nn.sigmoid(jnp.sum(edge_attr * params["t_w"], axis=1) + params["t_b"][0, 0])

    z_all = x @ params["w1"]
    heads = [_ref_gat_head(z_all[:, h * H:(h + 1) * H],
                           params["att_src1"][h:h + 1], params["att_dst1"][h:h + 1], adj)
             for h in range(2)]
    h1 = jax.nn.relu(jnp.concatenate(heads, axis=-1) + params["b1"])
    z2 = h1 @ params["w2"]
    h2 = jax.nn.relu(_ref_gat_head(z2, params["att_src2"], params["att_dst2"], adj) + params["b2"])
    h3 = jax.nn.relu(h2 @ params["lin1_w"] + params["lin1_b"])
    return h3 @ params["lin2_w"] + params["lin2_b"], edge_w


def init_params(key, node_features, hidden, num_classes):
    ks = jax.random.split(key, 12)

    def init(k, shape, fan_in):
        return (jax.random.normal(k, shape, jnp.float32) / np.sqrt(float(fan_in))).astype(jnp.float32)

    return {
        # temporal_attn: Linear(2, 1)  (stored as [1,2] row + [1,1] bias)
        "t_w": init(ks[0], (1, 2), 2),
        "t_b": jnp.zeros((1, 1), jnp.float32),
        # GATConv1: in=node_features, out=hidden, heads=2
        "w1": init(ks[1], (node_features, 2 * hidden), node_features),
        "att_src1": init(ks[2], (2, hidden), hidden),
        "att_dst1": init(ks[3], (2, hidden), hidden),
        "b1": jnp.zeros((1, 2 * hidden), jnp.float32),
        # GATConv2: in=2*hidden, out=hidden, heads=1
        "w2": init(ks[4], (2 * hidden, hidden), 2 * hidden),
        "att_src2": init(ks[5], (1, hidden), hidden),
        "att_dst2": init(ks[6], (1, hidden), hidden),
        "b2": jnp.zeros((1, hidden), jnp.float32),
        # lin1 / lin2
        "lin1_w": init(ks[7], (hidden, hidden), hidden),
        "lin1_b": init(ks[8], (1, hidden), hidden),
        "lin2_w": init(ks[9], (hidden, num_classes), hidden),
        "lin2_b": init(ks[10], (1, num_classes), hidden),
    }


if __name__ == "__main__":
    node_features, hidden, num_classes = 8, 32, 2
    N, E = 16, 48

    key = jax.random.PRNGKey(0)
    k_p, k_x, k_src, k_dst, k_ea = jax.random.split(key, 5)

    params = init_params(k_p, node_features, hidden, num_classes)
    x = jax.random.normal(k_x, (N, node_features), jnp.float32)
    edge_index = jnp.stack([jax.random.randint(k_src, (E,), 0, N),
                            jax.random.randint(k_dst, (E,), 0, N)], axis=0)
    edge_attr = jax.random.normal(k_ea, (E, 2), jnp.float32)

    out, edge_w = temporal_gnn_forward(x, edge_index, edge_attr, params)
    out = jax.block_until_ready(out)
    edge_w = jax.block_until_ready(edge_w)

    ref_out, ref_edge_w = temporal_gnn_reference(x, edge_index, edge_attr, params)
    np.testing.assert_allclose(np.asarray(out), np.asarray(ref_out), rtol=1e-4, atol=1e-4)
    np.testing.assert_allclose(np.asarray(edge_w), np.asarray(ref_edge_w), rtol=1e-4, atol=1e-4)

    assert out.shape == (N, num_classes) and edge_w.shape == (E,)
    print("KERNEL_OK")
</pallas_src>

<mosaic_0001>
module attributes {stable_mosaic.version = 11 : i64} {
  func.func @kernel(%arg0: memref<16x8xf32, #tpu.memory_space<vmem>>, %arg1: memref<16x16xi8, #tpu.memory_space<vmem>>, %arg2: memref<2x128xf32, #tpu.memory_space<vmem>>, %arg3: memref<232x128xf32, #tpu.memory_space<vmem>>, %arg4: memref<16x128xf32, #tpu.memory_space<vmem>>, %arg5: memref<1x128xf32, #tpu.memory_space<vmem>>) attributes {dimension_semantics = [], scalar_prefetch = 0 : i64, scratch_operands = 0 : i64, tpu.core_type = #tpu.core_type<tc>} {
    %c0 = arith.constant 0 : index
    %c0_0 = arith.constant 0 : index
    %0 = vector.load %arg0[%c0, %c0_0] : memref<16x8xf32, #tpu.memory_space<vmem>>, vector<16x8xf32>
    %c0_1 = arith.constant 0 : index
    %c0_2 = arith.constant 0 : index
    %1 = vector.load %arg1[%c0_1, %c0_2] : memref<16x16xi8, #tpu.memory_space<vmem>>, vector<16x16xi8>
    %2 = arith.sitofp %1 : vector<16x16xi8> to vector<16x16xf32>
    %cst = arith.constant 0.000000e+00 : f32
    %3 = vector.broadcast %cst : f32 to vector<16x16xf32>
    %4 = arith.cmpf ogt, %2, %3 : vector<16x16xf32>
    %c0_3 = arith.constant 0 : index
    %c0_4 = arith.constant 0 : index
    %5 = vector.load %arg3[%c0_3, %c0_4] : memref<232x128xf32, #tpu.memory_space<vmem>>, vector<8x64xf32>
    %cst_5 = arith.constant dense<0.000000e+00> : vector<16x64xf32>
    %6 = tpu.matmul %0, %5, %cst_5 {dimension_numbers = #tpu.dot_dimension_numbers<[1], [0], [0], [1], [0, 0, 1, 1], [], []>} : vector<16x8xf32>, vector<8x64xf32>, vector<16x64xf32> -> vector<16x64xf32>
    %7 = vector.extract_strided_slice %6 {offsets = [0, 0], sizes = [16, 32], strides = [1, 1]} : vector<16x64xf32> to vector<16x32xf32>
    %c8 = arith.constant 8 : index
    %c0_6 = arith.constant 0 : index
    %8 = vector.load %arg3[%c8, %c0_6] : memref<232x128xf32, #tpu.memory_space<vmem>>, vector<1x32xf32>
    %c24 = arith.constant 24 : index
    %c0_7 = arith.constant 0 : index
    %9 = vector.load %arg3[%c24, %c0_7] : memref<232x128xf32, #tpu.memory_space<vmem>>, vector<1x32xf32>
    %10 = vector.broadcast %8 : vector<1x32xf32> to vector<16x32xf32>
    %11 = arith.mulf %7, %10 : vector<16x32xf32>
    %cst_8 = arith.constant dense<0.000000e+00> : vector<16xf32>
    %12 = vector.multi_reduction <add>, %11, %cst_8 [1] : vector<16x32xf32> to vector<16xf32>
    %13 = vector.broadcast %9 : vector<1x32xf32> to vector<16x32xf32>
    %14 = arith.mulf %7, %13 : vector<16x32xf32>
    %cst_9 = arith.constant dense<0.000000e+00> : vector<16xf32>
    %15 = vector.multi_reduction <add>, %14, %cst_9 [1] : vector<16x32xf32> to vector<16xf32>
    %16 = vector.shape_cast %15 : vector<16xf32> to vector<16x1xf32>
    %17 = vector.shape_cast %12 : vector<16xf32> to vector<1x16xf32>
    %18 = vector.broadcast %16 : vector<16x1xf32> to vector<16x16xf32>
    %19 = vector.broadcast %17 : vector<1x16xf32> to vector<16x16xf32>
    %20 = arith.addf %18, %19 : vector<16x16xf32>
    %cst_10 = arith.constant 0.000000e+00 : f32
    %21 = vector.broadcast %cst_10 : f32 to vector<16x16xf32>
    %22 = arith.cmpf oge, %20, %21 : vector<16x16xf32>
    %cst_11 = arith.constant 2.000000e-01 : f32
    %23 = vector.broadcast %cst_11 : f32 to vector<16x16xf32>
    %24 = arith.mulf %23, %20 : vector<16x16xf32>
    %25 = arith.select %22, %20, %24 : vector<16x16xi1>, vector<16x16xf32>
    %cst_12 = arith.constant -1.000000e+30 : f32
    %26 = vector.broadcast %cst_12 : f32 to vector<16x16xf32>
    %27 = arith.select %4, %25, %26 : vector<16x16xi1>, vector<16x16xf32>
    %cst_13 = arith.constant dense<0xFF800000> : vector<16xf32>
    %28 = vector.multi_reduction <maximumf>, %27, %cst_13 [1] : vector<16x16xf32> to vector<16xf32>
    %29 = vector.shape_cast %28 : vector<16xf32> to vector<16x1xf32>
    %30 = vector.broadcast %29 : vector<16x1xf32> to vector<16x16xf32>
    %31 = arith.subf %27, %30 : vector<16x16xf32>
    %32 = math.exp %31 : vector<16x16xf32>
    %cst_14 = arith.constant dense<0.000000e+00> : vector<16xf32>
    %33 = vector.multi_reduction <add>, %32, %cst_14 [1] : vector<16x16xf32> to vector<16xf32>
    %34 = vector.shape_cast %33 : vector<16xf32> to vector<16x1xf32>
    %cst_15 = arith.constant dense<0.000000e+00> : vector<16x32xf32>
    %35 = tpu.matmul %32, %7, %cst_15 {dimension_numbers = #tpu.dot_dimension_numbers<[1], [0], [0], [1], [0, 0, 1, 1], [], []>} : vector<16x16xf32>, vector<16x32xf32>, vector<16x32xf32> -> vector<16x32xf32>
    %cst_16 = arith.constant 1.000000e-16 : f32
    %36 = vector.broadcast %cst_16 : f32 to vector<16x1xf32>
    %37 = arith.addf %34, %36 : vector<16x1xf32>
    %cst_17 = arith.constant 1.000000e+00 : f32
    %38 = vector.broadcast %cst_17 : f32 to vector<16x1xf32>
    %39 = arith.divf %38, %37 : vector<16x1xf32>
    %40 = vector.broadcast %39 : vector<16x1xf32> to vector<16x32xf32>
    %41 = arith.mulf %35, %40 : vector<16x32xf32>
    %42 = vector.extract_strided_slice %6 {offsets = [0, 32], sizes = [16, 32], strides = [1, 1]} : vector<16x64xf32> to vector<16x32xf32>
    %c16 = arith.constant 16 : index
    %c0_18 = arith.constant 0 : index
    %43 = vector.load %arg3[%c16, %c0_18] : memref<232x128xf32, #tpu.memory_space<vmem>>, vector<1x32xf32>
    %c32 = arith.constant 32 : index
    %c0_19 = arith.constant 0 : index
    %44 = vector.load %arg3[%c32, %c0_19] : memref<232x128xf32, #tpu.memory_space<vmem>>, vector<1x32xf32>
    %45 = vector.broadcast %43 : vector<1x32xf32> to vector<16x32xf32>
    %46 = arith.mulf %42, %45 : vector<16x32xf32>
    %cst_20 = arith.constant dense<0.000000e+00> : vector<16xf32>
    %47 = vector.multi_reduction <add>, %46, %cst_20 [1] : vector<16x32xf32> to vector<16xf32>
    %48 = vector.broadcast %44 : vector<1x32xf32> to vector<16x32xf32>
    %49 = arith.mulf %42, %48 : vector<16x32xf32>
    %cst_21 = arith.constant dense<0.000000e+00> : vector<16xf32>
    %50 = vector.multi_reduction <add>, %49, %cst_21 [1] : vector<16x32xf32> to vector<16xf32>
    %51 = vector.shape_cast %50 : vector<16xf32> to vector<16x1xf32>
    %52 = vector.shape_cast %47 : vector<16xf32> to vector<1x16xf32>
    %53 = vector.broadcast %51 : vector<16x1xf32> to vector<16x16xf32>
    %54 = vector.broadcast %52 : vector<1x16xf32> to vector<16x16xf32>
    %55 = arith.addf %53, %54 : vector<16x16xf32>
    %cst_22 = arith.constant 0.000000e+00 : f32
    %56 = vector.broadcast %cst_22 : f32 to vector<16x16xf32>
    %57 = arith.cmpf oge, %55, %56 : vector<16x16xf32>
    %cst_23 = arith.constant 2.000000e-01 : f32
    %58 = vector.broadcast %cst_23 : f32 to vector<16x16xf32>
    %59 = arith.mulf %58, %55 : vector<16x16xf32>
    %60 = arith.select %57, %55, %59 : vector<16x16xi1>, vector<16x16xf32>
    %cst_24 = arith.constant -1.000000e+30 : f32
    %61 = vector.broadcast %cst_24 : f32 to vector<16x16xf32>
    %62 = arith.select %4, %60, %61 : vector<16x16xi1>, vector<16x16xf32>
    %cst_25 = arith.constant dense<0xFF800000> : vector<16xf32>
    %63 = vector.multi_reduction <maximumf>, %62, %cst_25 [1] : vector<16x16xf32> to vector<16xf32>
    %64 = vector.shape_cast %63 : vector<16xf32> to vector<16x1xf32>
    %65 = vector.broadcast %64 : vector<16x1xf32> to vector<16x16xf32>
    %66 = arith.subf %62, %65 : vector<16x16xf32>
    %67 = math.exp %66 : vector<16x16xf32>
    %cst_26 = arith.constant dense<0.000000e+00> : vector<16xf32>
    %68 = vector.multi_reduction <add>, %67, %cst_26 [1] : vector<16x16xf32> to vector<16xf32>
    %69 = vector.shape_cast %68 : vector<16xf32> to vector<16x1xf32>
    %cst_27 = arith.constant dense<0.000000e+00> : vector<16x32xf32>
    %70 = tpu.matmul %67, %42, %cst_27 {dimension_numbers = #tpu.dot_dimension_numbers<[1], [0], [0], [1], [0, 0, 1, 1], [], []>} : vector<16x16xf32>, vector<16x32xf32>, vector<16x32xf32> -> vector<16x32xf32>
    %cst_28 = arith.constant 1.000000e-16 : f32
    %71 = vector.broadcast %cst_28 : f32 to vector<16x1xf32>
    %72 = arith.addf %69, %71 : vector<16x1xf32>
    %cst_29 = arith.constant 1.000000e+00 : f32
    %73 = vector.broadcast %cst_29 : f32 to vector<16x1xf32>
    %74 = arith.divf %73, %72 : vector<16x1xf32>
    %75 = vector.broadcast %74 : vector<16x1xf32> to vector<16x32xf32>
    %76 = arith.mulf %70, %75 : vector<16x32xf32>
    %c40 = arith.constant 40 : index
    %c0_30 = arith.constant 0 : index
    %77 = vector.load %arg3[%c40, %c0_30] : memref<232x128xf32, #tpu.memory_space<vmem>>, vector<1x64xf32>
    %78 = vector.extract_strided_slice %77 {offsets = [0, 0], sizes = [1, 32], strides = [1, 1]} : vector<1x64xf32> to vector<1x32xf32>
    %79 = vector.broadcast %78 : vector<1x32xf32> to vector<16x32xf32>
    %80 = arith.addf %41, %79 : vector<16x32xf32>
    %cst_31 = arith.constant 0.000000e+00 : f32
    %81 = vector.broadcast %cst_31 : f32 to vector<16x32xf32>
    %82 = arith.maximumf %80, %81 : vector<16x32xf32>
    %83 = vector.extract_strided_slice %77 {offsets = [0, 32], sizes = [1, 32], strides = [1, 1]} : vector<1x64xf32> to vector<1x32xf32>
    %84 = vector.broadcast %83 : vector<1x32xf32> to vector<16x32xf32>
    %85 = arith.addf %76, %84 : vector<16x32xf32>
    %cst_32 = arith.constant 0.000000e+00 : f32
    %86 = vector.broadcast %cst_32 : f32 to vector<16x32xf32>
    %87 = arith.maximumf %85, %86 : vector<16x32xf32>
    %c48 = arith.constant 48 : index
    %c0_33 = arith.constant 0 : index
    %88 = vector.load %arg3[%c48, %c0_33] : memref<232x128xf32, #tpu.memory_space<vmem>>, vector<32x32xf32>
    %cst_34 = arith.constant dense<0.000000e+00> : vector<16x32xf32>
    %89 = tpu.matmul %82, %88, %cst_34 {dimension_numbers = #tpu.dot_dimension_numbers<[1], [0], [0], [1], [0, 0, 1, 1], [], []>} : vector<16x32xf32>, vector<32x32xf32>, vector<16x32xf32> -> vector<16x32xf32>
    %c80 = arith.constant 80 : index
    %c0_35 = arith.constant 0 : index
    %90 = vector.load %arg3[%c80, %c0_35] : memref<232x128xf32, #tpu.memory_space<vmem>>, vector<32x32xf32>
    %cst_36 = arith.constant dense<0.000000e+00> : vector<16x32xf32>
    %91 = tpu.matmul %87, %90, %cst_36 {dimension_numbers = #tpu.dot_dimension_numbers<[1], [0], [0], [1], [0, 0, 1, 1], [], []>} : vector<16x32xf32>, vector<32x32xf32>, vector<16x32xf32> -> vector<16x32xf32>
    %92 = arith.addf %89, %91 : vector<16x32xf32>
    %c112 = arith.constant 112 : index
    %c0_37 = arith.constant 0 : index
    %93 = vector.load %arg3[%c112, %c0_37] : memref<232x128xf32, #tpu.memory_space<vmem>>, vector<1x32xf32>
    %c120 = arith.constant 120 : index
    %c0_38 = arith.constant 0 : index
    %94 = vector.load %arg3[%c120, %c0_38] : memref<232x128xf32, #tpu.memory_space<vmem>>, vector<1x32xf32>
    %95 = vector.broadcast %93 : vector<1x32xf32> to vector<16x32xf32>
    %96 = arith.mulf %92, %95 : vector<16x32xf32>
    %cst_39 = arith.constant dense<0.000000e+00> : vector<16xf32>
    %97 = vector.multi_reduction <add>, %96, %cst_39 [1] : vector<16x32xf32> to vector<16xf32>
    %98 = vector.broadcast %94 : vector<1x32xf32> to vector<16x32xf32>
    %99 = arith.mulf %92, %98 : vector<16x32xf32>
    %cst_40 = arith.constant dense<0.000000e+00> : vector<16xf32>
    %100 = vector.multi_reduction <add>, %99, %cst_40 [1] : vector<16x32xf32> to vector<16xf32>
    %101 = vector.shape_cast %100 : vector<16xf32> to vector<16x1xf32>
    %102 = vector.shape_cast %97 : vector<16xf32> to vector<1x16xf32>
    %103 = vector.broadcast %101 : vector<16x1xf32> to vector<16x16xf32>
    %104 = vector.broadcast %102 : vector<1x16xf32> to vector<16x16xf32>
    %105 = arith.addf %103, %104 : vector<16x16xf32>
    %cst_41 = arith.constant 0.000000e+00 : f32
    %106 = vector.broadcast %cst_41 : f32 to vector<16x16xf32>
    %107 = arith.cmpf oge, %105, %106 : vector<16x16xf32>
    %cst_42 = arith.constant 2.000000e-01 : f32
    %108 = vector.broadcast %cst_42 : f32 to vector<16x16xf32>
    %109 = arith.mulf %108, %105 : vector<16x16xf32>
    %110 = arith.select %107, %105, %109 : vector<16x16xi1>, vector<16x16xf32>
    %cst_43 = arith.constant -1.000000e+30 : f32
    %111 = vector.broadcast %cst_43 : f32 to vector<16x16xf32>
    %112 = arith.select %4, %110, %111 : vector<16x16xi1>, vector<16x16xf32>
    %cst_44 = arith.constant dense<0xFF800000> : vector<16xf32>
    %113 = vector.multi_reduction <maximumf>, %112, %cst_44 [1] : vector<16x16xf32> to vector<16xf32>
    %114 = vector.shape_cast %113 : vector<16xf32> to vector<16x1xf32>
    %115 = vector.broadcast %114 : vector<16x1xf32> to vector<16x16xf32>
    %116 = arith.subf %112, %115 : vector<16x16xf32>
    %117 = math.exp %116 : vector<16x16xf32>
    %cst_45 = arith.constant dense<0.000000e+00> : vector<16xf32>
    %118 = vector.multi_reduction <add>, %117, %cst_45 [1] : vector<16x16xf32> to vector<16xf32>
    %119 = vector.shape_cast %118 : vector<16xf32> to vector<16x1xf32>
    %cst_46 = arith.constant dense<0.000000e+00> : vector<16x32xf32>
    %120 = tpu.matmul %117, %92, %cst_46 {dimension_numbers = #tpu.dot_dimension_numbers<[1], [0], [0], [1], [0, 0, 1, 1], [], []>} : vector<16x16xf32>, vector<16x32xf32>, vector<16x32xf32> -> vector<16x32xf32>
    %cst_47 = arith.constant 1.000000e-16 : f32
    %121 = vector.broadcast %cst_47 : f32 to vector<16x1xf32>
    %122 = arith.addf %119, %121 : vector<16x1xf32>
    %cst_48 = arith.constant 1.000000e+00 : f32
    %123 = vector.broadcast %cst_48 : f32 to vector<16x1xf32>
    %124 = arith.divf %123, %122 : vector<16x1xf32>
    %125 = vector.broadcast %124 : vector<16x1xf32> to vector<16x32xf32>
    %126 = arith.mulf %120, %125 : vector<16x32xf32>
    %c128 = arith.constant 128 : index
    %c0_49 = arith.constant 0 : index
    %127 = vector.load %arg3[%c128, %c0_49] : memref<232x128xf32, #tpu.memory_space<vmem>>, vector<1x32xf32>
    %128 = vector.broadcast %127 : vector<1x32xf32> to vector<16x32xf32>
    %129 = arith.addf %126, %128 : vector<16x32xf32>
    %cst_50 = arith.constant 0.000000e+00 : f32
    %130 = vector.broadcast %cst_50 : f32 to vector<16x32xf32>
    %131 = arith.maximumf %129, %130 : vector<16x32xf32>
    %c136 = arith.constant 136 : index
    %c0_51 = arith.constant 0 : index
    %132 = vector.load %arg3[%c136, %c0_51] : memref<232x128xf32, #tpu.memory_space<vmem>>, vector<32x32xf32>
    %c168 = arith.constant 168 : index
    %c0_52 = arith.constant 0 : index
    %133 = vector.load %arg3[%c168, %c0_52] : memref<232x128xf32, #tpu.memory_space<vmem>>, vector<1x32xf32>
    %cst_53 = arith.constant dense<0.000000e+00> : vector<16x32xf32>
    %134 = tpu.matmul %131, %132, %cst_53 {dimension_numbers = #tpu.dot_dimension_numbers<[1], [0], [0], [1], [0, 0, 1, 1], [], []>} : vector<16x32xf32>, vector<32x32xf32>, vector<16x32xf32> -> vector<16x32xf32>
    %135 = vector.broadcast %133 : vector<1x32xf32> to vector<16x32xf32>
    %136 = arith.addf %134, %135 : vector<16x32xf32>
    %cst_54 = arith.constant 0.000000e+00 : f32
    %137 = vector.broadcast %cst_54 : f32 to vector<16x32xf32>
    %138 = arith.maximumf %136, %137 : vector<16x32xf32>
    %c176 = arith.constant 176 : index
    %c0_55 = arith.constant 0 : index
    %139 = vector.load %arg3[%c176, %c0_55] : memref<232x128xf32, #tpu.memory_space<vmem>>, vector<32x128xf32>
    %c208 = arith.constant 208 : index
    %c0_56 = arith.constant 0 : index
    %140 = vector.load %arg3[%c208, %c0_56] : memref<232x128xf32, #tpu.memory_space<vmem>>, vector<1x128xf32>
    %cst_57 = arith.constant dense<0.000000e+00> : vector<16x128xf32>
    %141 = tpu.matmul %138, %139, %cst_57 {dimension_numbers = #tpu.dot_dimension_numbers<[1], [0], [0], [1], [0, 0, 1, 1], [], []>} : vector<16x32xf32>, vector<32x128xf32>, vector<16x128xf32> -> vector<16x128xf32>
    %142 = vector.broadcast %140 : vector<1x128xf32> to vector<16x128xf32>
    %143 = arith.addf %141, %142 : vector<16x128xf32>
    %c0_58 = arith.constant 0 : index
    %c0_59 = arith.constant 0 : index
    %144 = vector.load %arg4[%c0_58, %c0_59] : memref<16x128xf32, #tpu.memory_space<vmem>>, vector<16x128xf32>
    tpu.vector_store %arg4[%c0_58, %c0_59], %143 {strides = array<i32>} : memref<16x128xf32, #tpu.memory_space<vmem>>, vector<16x128xf32>,
    %c0_60 = arith.constant 0 : index
    %c0_61 = arith.constant 0 : index
    %145 = vector.load %arg2[%c0_60, %c0_61] : memref<2x128xf32, #tpu.memory_space<vmem>>, vector<2x128xf32>
    %c216 = arith.constant 216 : index
    %c0_62 = arith.constant 0 : index
    %146 = vector.load %arg3[%c216, %c0_62] : memref<232x128xf32, #tpu.memory_space<vmem>>, vector<2x1xf32>
    %c224 = arith.constant 224 : index
    %c0_63 = arith.constant 0 : index
    %147 = vector.load %arg3[%c224, %c0_63] : memref<232x128xf32, #tpu.memory_space<vmem>>, vector<1x1xf32>
    %148 = vector.broadcast %146 : vector<2x1xf32> to vector<2x128xf32>
    %149 = arith.mulf %145, %148 : vector<2x128xf32>
    %cst_64 = arith.constant dense<0.000000e+00> : vector<128xf32>
    %150 = vector.multi_reduction <add>, %149, %cst_64 [0] : vector<2x128xf32> to vector<128xf32>
    %151 = vector.shape_cast %150 : vector<128xf32> to vector<1x128xf32>
    %152 = vector.broadcast %147 : vector<1x1xf32> to vector<1x128xf32>
    %153 = arith.addf %151, %152 : vector<1x128xf32>
    %cst_65 = arith.constant 0.000000e+00 : f32
    %154 = vector.broadcast %cst_65 : f32 to vector<1x128xf32>
    %155 = arith.subf %154, %153 : vector<1x128xf32>
    %156 = math.exp %155 : vector<1x128xf32>
    %cst_66 = arith.constant 1.000000e+00 : f32
    %157 = vector.broadcast %cst_66 : f32 to vector<1x128xf32>
    %158 = arith.addf %157, %156 : vector<1x128xf32>
    %cst_67 = arith.constant 1.000000e+00 : f32
    %159 = vector.broadcast %cst_67 : f32 to vector<1x128xf32>
    %160 = arith.divf %159, %158 : vector<1x128xf32>
    %c0_68 = arith.constant 0 : index
    %c0_69 = arith.constant 0 : index
    %161 = vector.load %arg5[%c0_68, %c0_69] : memref<1x128xf32, #tpu.memory_space<vmem>>, vector<1x128xf32>
    tpu.vector_store %arg5[%c0_68, %c0_69], %160 {strides = array<i32>} : memref<1x128xf32, #tpu.memory_space<vmem>>, vector<1x128xf32>,
    return
  }
}

</mosaic_0001>

<llo_original>
// kernel: tpu_custom_call.1
$region0: #{tpu_custom_call.1}
  #allocation0 [shape = 'u32[]', space=smem, size = 0x4, offset = 0x4, fixed_abs, tag = 'smem constant byte address 0x4 - core index']
  #allocation1 [shape = 'u32[144,128]{1,0:T(1,128)}', space=vmem, size = 0x12000, scoped, tag = 'internal scratch']
  %s0 = inlined_call_operand.vmem [shape: f32[16,8], index: 0, kind: input, shape index: {}]
  %s1 = inlined_call_operand.vmem [shape: s8[16,16], index: 1, kind: input, shape index: {}]
  %s2 = inlined_call_operand.vmem [shape: f32[2,128], index: 2, kind: input, shape index: {}]
  %s3 = inlined_call_operand.hbm [shape: f32[232,128], index: 3, kind: input, shape index: {}]
  %s4 = inlined_call_operand.hbm [shape: f32[16,128], index: 4, kind: output, shape index: {0}]
  %s5 = inlined_call_operand.hbm [shape: f32[1,128], index: 5, kind: output, shape index: {1}]
  %6 = xla_tuple %s4, %s5
  %s7 = sld [smem:[#allocation0]]
  $region38: #{tpu_custom_call.1} parent=0
    _
  %s9 = ssub.s32 1, %s7
  %s10 = scalar_select 0, %s9, %s7
  $region1: #{tpu_custom_call.1} parent=0
    #allocation2 [shape = 'u8[118784]{0}', space=vmem, size = 0x1d000, scoped, tag = 'input window, operand 3, single buffered']
    #allocation3 [shape = 's32[1]{0}', space=sflag, size = 0x4, scoped, tag = 'scoped memory for tpu_custom_call.1']
    #allocation4 [shape = 's32[1]{0}', space=sflag, size = 0x4, scoped, tag = 'scoped memory for tpu_custom_call.1']
    #allocation5 [shape = 'u8[8192]{0}', space=vmem, size = 0x2000, scoped, tag = 'output window, operand 0, single buffered']
    #allocation6 [shape = 'u8[512]{0}', space=vmem, size = 0x400, scoped, tag = 'output window, operand 1, single buffered']
    #allocation7 [shape = 's32[1]{0}', space=sflag, size = 0x4, scoped, tag = 'scoped memory for tpu_custom_call.1']
    %11 = vsyncpa [#allocation3], 0
    %12 = vsyncpa [#allocation4], 0
    %13 = vsyncpa [#allocation7], 0
    // Predicated region
    $region2: #{tpu_custom_call.1} parent=1 // pred_check
      _
    $region3: #{tpu_custom_call.1} parent=1 // pred_check_branch
      %15 = sbr.rel (0) target = $region5
    $region4: #{tpu_custom_call.1} parent=1 // pred_region
      _
    $region5: #{tpu_custom_call.1} parent=1 // pred_fallthru
      _
    // Predicated region
    $region6: #{tpu_custom_call.1} parent=1 // pred_check
      _
    $region7: #{tpu_custom_call.1} parent=1 // pred_check_branch
      %17 = sbr.rel (0) target = $region9
    $region8: #{tpu_custom_call.1} parent=1 // pred_region
      _
    $region9: #{tpu_custom_call.1} parent=1 // pred_fallthru
      _
    // Predicated region
    $region10: #{tpu_custom_call.1} parent=1 // pred_check
      _
    $region11: #{tpu_custom_call.1} parent=1 // pred_check_branch
      %19 = sbr.rel (0) target = $region13
    $region12: #{tpu_custom_call.1} parent=1 // pred_region
      _
    $region13: #{tpu_custom_call.1} parent=1 // pred_fallthru
      _
    // Predicated region
    $region14: #{tpu_custom_call.1} parent=1 // pred_check
      _
    $region15: #{tpu_custom_call.1} parent=1 // pred_check_branch
      %21 = sbr.rel (0) target = $region17
    $region16: #{tpu_custom_call.1} parent=1 // pred_region
      %s23 = ssub.s32 3712, 3712
      %24 = vsyncadd [#allocation3], %s23
      %s25 = sshll.u32 [#allocation2], 4
      %s26 = int_to_ptr.vmem [resolvable:$true] %s25
      %31 = dma.hbm_to_vmem [thread:$0]  %s3, 3712, %s26, [#allocation3], 128, 128, 8
    $region17: #{tpu_custom_call.1} parent=1 // pred_fallthru
      _
    // Predicated region
    $region18: #{tpu_custom_call.1} parent=1 // pred_check
      _
    $region19: #{tpu_custom_call.1} parent=1 // pred_check_branch
      %33 = sbr.rel (0) target = $region21
    $region20: #{tpu_custom_call.1} parent=1 // pred_region
      %34 = dma.done [#allocation3], 3712
    $region21: #{tpu_custom_call.1} parent=1 // pred_fallthru
      _
    %v35 = vld [vmem:[%s0] sm:$0xff]
    %v36 = vld [vmem:[%s0 + $0x8] sm:$0xff]
    %v37 = vld [vmem:[%s1] sm:$0x3]
    %v38 = vld [vmem:[%s1 + $0x2] sm:$0x3]
    %v39 = vunpack.c.0.s8 %v37
    %v40 = vunpack.c.0.s8 %v38
    %v41 = vcvt.s32.f32 %v39
    %v42 = vcvt.s32.f32 %v40
    %vm43 = vcmp.gt.f32.partialorder %v41, 0.0
    %vm44 = vcmp.gt.f32.partialorder %v42, 0.0
    %v45 = vld [vmem:[#allocation2] sm:$0xff]
    %vm46 = vcmask 64512
    %v48 = vsel %vm46, %v35, 0
    %v51 = vsel %vm46, %v36, 0
    %53 = vmatprep.subr.mxu0 0.0
    %54 = vmatpush1.msra.mxu0 %v45
    %55 = vmatprep.subr.mxu0 0.0
    %56 = vmatpush1.msra.mxu0 0.0
    %57 = vmatprep.subr.mxu0 0.0
    %58 = vmatpush1.msra.mxu0 0.0
    %59 = vmatprep.subr.mxu0 0.0
    %60 = vmatpush1.msra.mxu0 0.0
    %61 = vmatprep.subr.mxu0 0.0
    %62 = vmatpush1.msra.mxu0 0.0
    %63 = vmatprep.subr.mxu0 0.0
    %64 = vmatpush1.msra.mxu0 0.0
    %65 = vmatprep.subr.mxu0 0.0
    %66 = vmatpush1.msra.mxu0 0.0
    %67 = vmatprep.subr.mxu0 0.0
    %68 = vmatpush1.msra.mxu0 0.0
    %69 = vmatprep.subr.mxu0 0.0
    %70 = vmatpush1.msra.mxu0 0.0
    %71 = vmatprep.subr.mxu0 0.0
    %72 = vmatpush1.msra.mxu0 0.0
    %73 = vmatprep.subr.mxu0 0.0
    %74 = vmatpush1.msra.mxu0 0.0
    %75 = vmatprep.subr.mxu0 0.0
    %76 = vmatpush1.msra.mxu0 0.0
    %77 = vmatprep.subr.mxu0 0.0
    %78 = vmatpush1.msra.mxu0 0.0
    %79 = vmatprep.subr.mxu0 0.0
    %80 = vmatpush1.msra.mxu0 0.0
    %81 = vmatprep.subr.mxu0 0.0
    %82 = vmatpush1.msra.mxu0 0.0
    %83 = vmatprep.subr.mxu0 0.0
    %84 = vmatpush1.msra.mxu0 0.0
    %85 = vmatprep.subr.mxu0 0.0
    %86 = vmatpush1.msra.mxu0 0.0
    %87 = vmatprep.subr.mxu0 0.0
    %88 = vmatpush1.msra.mxu0 0.0
    %89 = vmatprep.subr.mxu0 0.0
    %90 = vmatpush1.msra.mxu0 0.0
    %91 = vmatprep.subr.mxu0 0.0
    %92 = vmatpush1.msra.mxu0 0.0
    %93 = vmatprep.subr.mxu0 0.0
    %94 = vmatpush1.msra.mxu0 0.0
    %95 = vmatprep.subr.mxu0 0.0
    %96 = vmatpush1.msra.mxu0 0.0
    %97 = vmatprep.subr.mxu0 0.0
    %98 = vmatpush1.msra.mxu0 0.0
    %99 = vmatprep.subr.mxu0 0.0
    %100 = vmatpush1.msra.mxu0 0.0
    %101 = vmatprep.subr.mxu0 0.0
    %102 = vmatpush1.msra.mxu0 0.0
    %103 = vmatprep.subr.mxu0 0.0
    %104 = vmatpush1.msra.mxu0 0.0
    %105 = vmatprep.subr.mxu0 0.0
    %106 = vmatpush1.msra.mxu0 0.0
    %107 = vmatprep.subr.mxu0 0.0
    %108 = vmatpush1.msra.mxu0 0.0
    %109 = vmatprep.subr.mxu0 0.0
    %110 = vmatpush1.msra.mxu0 0.0
    %111 = vmatprep.subr.mxu0 0.0
    %112 = vmatpush1.msra.mxu0 0.0
    %113 = vmatprep.subr.mxu0 0.0
    %114 = vmatpush1.msra.mxu0 0.0
    %115 = vmatprep.subr.mxu0 0.0
    %116 = vmatpush1.msra.mxu0 0.0
    %117 = vmatprep.mubr.f32.mxu0 0.0
    %118 = vmatmul.mubr.f32.gmra.mrb[0].mxu0 %v48
    %v119 = vpop.f32.mrb[0].mxu0
    %v120 = vadd.f32 0.0, %v119
    %v121 = vpop.f32.mrb[0].mxu0
    %122 = vmatprep.mubr.f32.mxu0 0.0
    %123 = vmatmul.mubr.f32.gmra.mrb[0].mxu0 %v51
    %v124 = vpop.f32.mrb[0].mxu0
    %v125 = vadd.f32 0.0, %v124
    %v126 = vpop.f32.mrb[0].mxu0
    %127 = vdwg.mxu0
    %v128 = vld [vmem:[#allocation2 + $0x8] sm:$0x1]
    %v129 = vld [vmem:[#allocation2 + $0x18] sm:$0x1]
    %v130 = vlaneseq
    %v131 = vshrl.u32 %v130, 7
    %v132 = vsub.s32 0, %v131
    %v133 = vrot.slane %v128, %v132
    %v134 = vmul.f32 %v120, %v133
    %v135 = vmul.f32 %v125, %v133
    %vm136 = vcmask 261120
    %v137 = vsel %vm136, %v134, 0.0
    %138 = vadd.xlane.f32.xlu0 %v137
    %v139 = vpop.xlane.xlu0 %138
    %v140 = vsel %vm136, %v135, 0.0
    %141 = vadd.xlane.f32.xlu0 %v140
    %v142 = vpop.xlane.xlu0 %141
    %v143 = vlaneseq
    %v144 = vshrl.u32 %v143, 7
    %v145 = vsub.s32 0, %v144
    %v146 = vrot.slane %v129, %v145
    %v147 = vmul.f32 %v120, %v146
    %v148 = vmul.f32 %v125, %v146
    %v149 = vsel %vm136, %v147, 0.0
    %150 = vadd.xlane.f32.xlu0 %v149
    %v151 = vpop.xlane.xlu0 %150
    %v152 = vsel %vm136, %v148, 0.0
    %153 = vadd.xlane.f32.xlu0 %v152
    %v154 = vpop.xlane.xlu0 %153
    %v157 = vlaneseq
    %v158 = vand.u32 %v157, 127
    %v159 = vlaneseq
    %v160 = vshrl.u32 %v159, 7
    %v161 = vsub.s32 %v158, %v160
    %v162 = vrot.slane %v139, %v161
    %v163 = vadd.s32 %v158, 4294967288
    %v164 = vlaneseq
    %v165 = vshrl.u32 %v164, 7
    %v166 = vsub.s32 %v163, %v165
    %v167 = vrot.slane %v142, %v166
    %vm168 = vcmask 130112
    %v169 = vsel %vm168, %v167, %v162
    %vm170 = vcmask 1042434
    %v171 = vsel %vm170, %v169, %v169
    %vm172 = vcmask 1043459
    %v173 = vsel %vm172, %v169, %v171
    %vm174 = vcmask 1044484
    %v175 = vsel %vm174, %v169, %v173
    %vm176 = vcmask 1045509
    %v177 = vsel %vm176, %v169, %v175
    %vm178 = vcmask 1046534
    %v179 = vsel %vm178, %v169, %v177
    %vm180 = vcmask 1047559
    %v181 = vsel %vm180, %v169, %v179
    %v183 = vadd.f32 %v151, %v181
    %v184 = vadd.f32 %v154, %v181
    %vm185 = vcmp.ge.f32.partialorder %v183, 0.0
    %vm186 = vcmp.ge.f32.partialorder %v184, 0.0
    %v187 = vmul.f32 %v183, 0.2
    %v188 = vmul.f32 %v184, 0.2
    %v189 = vsel %vm185, %v183, %v187
    %v190 = vsel %vm186, %v184, %v188
    %v191 = vsel %vm43, %v189, -1e+30
    %v192 = vsel %vm44, %v190, -1e+30
    %vm193 = vcmask 130048
    %v194 = vsel %vm193, %v191, -inf
    %195 = vmax.xlane.f32.xlu0 %v194
    %v196 = vpop.xlane.xlu0 %195
    %v197 = vsel %vm193, %v192, -inf
    %198 = vmax.xlane.f32.xlu0 %v197
    %v199 = vpop.xlane.xlu0 %198
    %v200 = vsub.f32 %v191, %v196
    %v201 = vsub.f32 %v192, %v199
    %v202 = vmul.f32 %v200, 1.442695
    %v203 = vpow.pop %v202
    %v204 = vmul.f32 %v201, 1.442695
    %v205 = vpow.pop %v204
    %v206 = vsel %vm193, %v203, 0.0
    %207 = vadd.xlane.f32.xlu0 %v206
    %v208 = vpop.xlane.xlu0 %207
    %v209 = vsel %vm193, %v205, 0.0
    %210 = vadd.xlane.f32.xlu0 %v209
    %v211 = vpop.xlane.xlu0 %210
    %v213 = vsel %vm193, %v203, 0
    %v216 = vsel %vm193, %v205, 0
    %218 = vmatprep.subr.mxu0 0.0
    %219 = vmatpush1.msra.mxu0 %v120
    %220 = vmatprep.subr.mxu0 0.0
    %221 = vmatpush1.msra.mxu0 %v125
    %222 = vmatprep.subr.mxu0 0.0
    %223 = vmatpush1.msra.mxu0 0.0
    %224 = vmatprep.subr.mxu0 0.0
    %225 = vmatpush1.msra.mxu0 0.0
    %226 = vmatprep.subr.mxu0 0.0
    %227 = vmatpush1.msra.mxu0 0.0
    %228 = vmatprep.subr.mxu0 0.0
    %229 = vmatpush1.msra.mxu0 0.0
    %230 = vmatprep.subr.mxu0 0.0
    %231 = vmatpush1.msra.mxu0 0.0
    %232 = vmatprep.subr.mxu0 0.0
    %233 = vmatpush1.msra.mxu0 0.0
    %234 = vmatprep.subr.mxu0 0.0
    %235 = vmatpush1.msra.mxu0 0.0
    %236 = vmatprep.subr.mxu0 0.0
    %237 = vmatpush1.msra.mxu0 0.0
    %238 = vmatprep.subr.mxu0 0.0
    %239 = vmatpush1.msra.mxu0 0.0
    %240 = vmatprep.subr.mxu0 0.0
    %241 = vmatpush1.msra.mxu0 0.0
    %242 = vmatprep.subr.mxu0 0.0
    %243 = vmatpush1.msra.mxu0 0.0
    %244 = vmatprep.subr.mxu0 0.0
    %245 = vmatpush1.msra.mxu0 0.0
    %246 = vmatprep.subr.mxu0 0.0
    %247 = vmatpush1.msra.mxu0 0.0
    %248 = vmatprep.subr.mxu0 0.0
    %249 = vmatpush1.msra.mxu0 0.0
    %250 = vmatprep.subr.mxu0 0.0
    %251 = vmatpush1.msra.mxu0 0.0
    %252 = vmatprep.subr.mxu0 0.0
    %253 = vmatpush1.msra.mxu0 0.0
    %254 = vmatprep.subr.mxu0 0.0
    %255 = vmatpush1.msra.mxu0 0.0
    %256 = vmatprep.subr.mxu0 0.0
    %257 = vmatpush1.msra.mxu0 0.0
    %258 = vmatprep.subr.mxu0 0.0
    %259 = vmatpush1.msra.mxu0 0.0
    %260 = vmatprep.subr.mxu0 0.0
    %261 = vmatpush1.msra.mxu0 0.0
    %262 = vmatprep.subr.mxu0 0.0
    %263 = vmatpush1.msra.mxu0 0.0
    %264 = vmatprep.subr.mxu0 0.0
    %265 = vmatpush1.msra.mxu0 0.0
    %266 = vmatprep.subr.mxu0 0.0
    %267 = vmatpush1.msra.mxu0 0.0
    %268 = vmatprep.subr.mxu0 0.0
    %269 = vmatpush1.msra.mxu0 0.0
    %270 = vmatprep.subr.mxu0 0.0
    %271 = vmatpush1.msra.mxu0 0.0
    %272 = vmatprep.subr.mxu0 0.0
    %273 = vmatpush1.msra.mxu0 0.0
    %274 = vmatprep.subr.mxu0 0.0
    %275 = vmatpush1.msra.mxu0 0.0
    %276 = vmatprep.subr.mxu0 0.0
    %277 = vmatpush1.msra.mxu0 0.0
    %278 = vmatprep.subr.mxu0 0.0
    %279 = vmatpush1.msra.mxu0 0.0
    %280 = vmatprep.subr.mxu0 0.0
    %281 = vmatpush1.msra.mxu0 0.0
    %282 = vmatprep.mubr.f32.mxu0 0.0
    %283 = vmatmul.mubr.f32.gmra.mrb[0].mxu0 %v213
    %v284 = vpop.f32.mrb[0].mxu0
    %v285 = vadd.f32 0.0, %v284
    %v286 = vpop.f32.mrb[0].mxu0
    %287 = vmatprep.mubr.f32.mxu0 0.0
    %288 = vmatmul.mubr.f32.gmra.mrb[0].mxu0 %v216
    %v289 = vpop.f32.mrb[0].mxu0
    %v290 = vadd.f32 0.0, %v289
    %v291 = vpop.f32.mrb[0].mxu0
    %292 = vdwg.mxu0
    %v293 = vadd.f32 %v208, 1e-16
    %v294 = vadd.f32 %v211, 1e-16
    %v295 = vrcp.pop %v293
    %v296 = vmul.f32 1.0, %v295
    %v297 = vrcp.pop %v294
    %v298 = vmul.f32 1.0, %v297
    %v299 = vmul.f32 %v285, %v296
    %v300 = vmul.f32 %v290, %v298
    %v301 = vld [vmem:[#allocation2 + $0x10] sm:$0x1]
    %v302 = vld [vmem:[#allocation2 + $0x20] sm:$0x1]
    %v303 = vlaneseq
    %v304 = vshrl.u32 %v303, 7
    %v305 = vsub.s32 0, %v304
    %v306 = vrot.slane %v301, %v305
    %308 = vrot.lane.b32.xlu0 %v306, 32
    %v309 = vpop.permute.xlu0 %308
    %v311 = vmul.f32 %v120, %v309
    %v312 = vmul.f32 %v125, %v309
    %315 = vrot.lane.b32.xlu0 %v311, 96
    %v316 = vpop.permute.xlu0 %315
    %317 = vrot.lane.b32.xlu0 %v312, 96
    %v318 = vpop.permute.xlu0 %317
    %v321 = vsel %vm136, %v316, 0.0
    %322 = vadd.xlane.f32.xlu0 %v321
    %v323 = vpop.xlane.xlu0 %322
    %v324 = vsel %vm136, %v318, 0.0
    %325 = vadd.xlane.f32.xlu0 %v324
    %v326 = vpop.xlane.xlu0 %325
    %v327 = vlaneseq
    %v328 = vshrl.u32 %v327, 7
    %v329 = vsub.s32 0, %v328
    %v330 = vrot.slane %v302, %v329
    %332 = vrot.lane.b32.xlu0 %v330, 32
    %v333 = vpop.permute.xlu0 %332
    %v335 = vmul.f32 %v120, %v333
    %v336 = vmul.f32 %v125, %v333
    %339 = vrot.lane.b32.xlu0 %v335, 96
    %v340 = vpop.permute.xlu0 %339
    %341 = vrot.lane.b32.xlu0 %v336, 96
    %v342 = vpop.permute.xlu0 %341
    %v345 = vsel %vm136, %v340, 0.0
    %346 = vadd.xlane.f32.xlu0 %v345
    %v347 = vpop.xlane.xlu0 %346
    %v348 = vsel %vm136, %v342, 0.0
    %349 = vadd.xlane.f32.xlu0 %v348
    %v350 = vpop.xlane.xlu0 %349
    %v353 = vlaneseq
    %v354 = vshrl.u32 %v353, 7
    %v355 = vsub.s32 %v158, %v354
    %v356 = vrot.slane %v323, %v355
    %v357 = vlaneseq
    %v358 = vshrl.u32 %v357, 7
    %v359 = vsub.s32 %v163, %v358
    %v360 = vrot.slane %v326, %v359
    %v361 = vsel %vm168, %v360, %v356
    %v362 = vsel %vm170, %v361, %v361
    %v363 = vsel %vm172, %v361, %v362
    %v364 = vsel %vm174, %v361, %v363
    %v365 = vsel %vm176, %v361, %v364
    %v366 = vsel %vm178, %v361, %v365
    %v367 = vsel %vm180, %v361, %v366
    %v369 = vadd.f32 %v347, %v367
    %v370 = vadd.f32 %v350, %v367
    %vm371 = vcmp.ge.f32.partialorder %v369, 0.0
    %vm372 = vcmp.ge.f32.partialorder %v370, 0.0
    %v373 = vmul.f32 %v369, 0.2
    %v374 = vmul.f32 %v370, 0.2
    %v375 = vsel %vm371, %v369, %v373
    %v376 = vsel %vm372, %v370, %v374
    %v377 = vsel %vm43, %v375, -1e+30
    %v378 = vsel %vm44, %v376, -1e+30
    %v379 = vsel %vm193, %v377, -inf
    %380 = vmax.xlane.f32.xlu0 %v379
    %v381 = vpop.xlane.xlu0 %380
    %v382 = vsel %vm193, %v378, -inf
    %383 = vmax.xlane.f32.xlu0 %v382
    %v384 = vpop.xlane.xlu0 %383
    %v385 = vsub.f32 %v377, %v381
    %v386 = vsub.f32 %v378, %v384
    %v387 = vmul.f32 %v385, 1.442695
    %v388 = vpow.pop %v387
    %v389 = vmul.f32 %v386, 1.442695
    %v390 = vpow.pop %v389
    %v391 = vsel %vm193, %v388, 0.0
    %392 = vadd.xlane.f32.xlu0 %v391
    %v393 = vpop.xlane.xlu0 %392
    %v394 = vsel %vm193, %v390, 0.0
    %395 = vadd.xlane.f32.xlu0 %v394
    %v396 = vpop.xlane.xlu0 %395
    %399 = vrot.lane.b32.xlu0 %v120, 96
    %v400 = vpop.permute.xlu0 %399
    %401 = vrot.lane.b32.xlu0 %v125, 96
    %v402 = vpop.permute.xlu0 %401
    %v406 = vsel %vm193, %v388, 0
    %v409 = vsel %vm193, %v390, 0
    %411 = vmatprep.subr.mxu0 0.0
    %412 = vmatpush1.msra.mxu0 %v400
    %413 = vmatprep.subr.mxu0 0.0
    %414 = vmatpush1.msra.mxu0 %v402
    %415 = vmatprep.subr.mxu0 0.0
    %416 = vmatpush1.msra.mxu0 0.0
    %417 = vmatprep.subr.mxu0 0.0
    %418 = vmatpush1.msra.mxu0 0.0
    %419 = vmatprep.subr.mxu0 0.0
    %420 = vmatpush1.msra.mxu0 0.0
    %421 = vmatprep.subr.mxu0 0.0
    %422 = vmatpush1.msra.mxu0 0.0
    %423 = vmatprep.subr.mxu0 0.0
    %424 = vmatpush1.msra.mxu0 0.0
    %425 = vmatprep.subr.mxu0 0.0
    %426 = vmatpush1.msra.mxu0 0.0
    %427 = vmatprep.subr.mxu0 0.0
    %428 = vmatpush1.msra.mxu0 0.0
    %429 = vmatprep.subr.mxu0 0.0
    %430 = vmatpush1.msra.mxu0 0.0
    %431 = vmatprep.subr.mxu0 0.0
    %432 = vmatpush1.msra.mxu0 0.0
    %433 = vmatprep.subr.mxu0 0.0
    %434 = vmatpush1.msra.mxu0 0.0
    %435 = vmatprep.subr.mxu0 0.0
    %436 = vmatpush1.msra.mxu0 0.0
    %437 = vmatprep.subr.mxu0 0.0
    %438 = vmatpush1.msra.mxu0 0.0
    %439 = vmatprep.subr.mxu0 0.0
    %440 = vmatpush1.msra.mxu0 0.0
    %441 = vmatprep.subr.mxu0 0.0
    %442 = vmatpush1.msra.mxu0 0.0
    %443 = vmatprep.subr.mxu0 0.0
    %444 = vmatpush1.msra.mxu0 0.0
    %445 = vmatprep.subr.mxu0 0.0
    %446 = vmatpush1.msra.mxu0 0.0
    %447 = vmatprep.subr.mxu0 0.0
    %448 = vmatpush1.msra.mxu0 0.0
    %449 = vmatprep.subr.mxu0 0.0
    %450 = vmatpush1.msra.mxu0 0.0
    %451 = vmatprep.subr.mxu0 0.0
    %452 = vmatpush1.msra.mxu0 0.0
    %453 = vmatprep.subr.mxu0 0.0
    %454 = vmatpush1.msra.mxu0 0.0
    %455 = vmatprep.subr.mxu0 0.0
    %456 = vmatpush1.msra.mxu0 0.0
    %457 = vmatprep.subr.mxu0 0.0
    %458 = vmatpush1.msra.mxu0 0.0
    %459 = vmatprep.subr.mxu0 0.0
    %460 = vmatpush1.msra.mxu0 0.0
    %461 = vmatprep.subr.mxu0 0.0
    %462 = vmatpush1.msra.mxu0 0.0
    %463 = vmatprep.subr.mxu0 0.0
    %464 = vmatpush1.msra.mxu0 0.0
    %465 = vmatprep.subr.mxu0 0.0
    %466 = vmatpush1.msra.mxu0 0.0
    %467 = vmatprep.subr.mxu0 0.0
    %468 = vmatpush1.msra.mxu0 0.0
    %469 = vmatprep.subr.mxu0 0.0
    %470 = vmatpush1.msra.mxu0 0.0
    %471 = vmatprep.subr.mxu0 0.0
    %472 = vmatpush1.msra.mxu0 0.0
    %473 = vmatprep.subr.mxu0 0.0
    %474 = vmatpush1.msra.mxu0 0.0
    %475 = vmatprep.mubr.f32.mxu0 0.0
    %476 = vmatmul.mubr.f32.gmra.mrb[0].mxu0 %v406
    %v477 = vpop.f32.mrb[0].mxu0
    %v478 = vadd.f32 0.0, %v477
    %v479 = vpop.f32.mrb[0].mxu0
    %480 = vmatprep.mubr.f32.mxu0 0.0
    %481 = vmatmul.mubr.f32.gmra.mrb[0].mxu0 %v409
    %v482 = vpop.f32.mrb[0].mxu0
    %v483 = vadd.f32 0.0, %v482
    %v484 = vpop.f32.mrb[0].mxu0
    %485 = vdwg.mxu0
    %v486 = vadd.f32 %v393, 1e-16
    %v487 = vadd.f32 %v396, 1e-16
    %v488 = vrcp.pop %v486
    %v489 = vmul.f32 1.0, %v488
    %v490 = vrcp.pop %v487
    %v491 = vmul.f32 1.0, %v490
    %v492 = vmul.f32 %v478, %v489
    %v493 = vmul.f32 %v483, %v491
    %v494 = vld [vmem:[#allocation2 + $0x28] sm:$0x1]
    %v495 = vlaneseq
    %v496 = vshrl.u32 %v495, 7
    %v497 = vsub.s32 0, %v496
    %v498 = vrot.slane %v494, %v497
    %v499 = vadd.f32 %v299, %v498
    %v500 = vadd.f32 %v300, %v498
    %v501 = vmax.f32 %v499, 0.0
    %v502 = vmax.f32 %v500, 0.0
    %504 = vrot.lane.b32.xlu0 %v498, 96
    %v505 = vpop.permute.xlu0 %504
    %v507 = vadd.f32 %v492, %v505
    %v508 = vadd.f32 %v493, %v505
    %v509 = vmax.f32 %v507, 0.0
    %v510 = vmax.f32 %v508, 0.0
    %v511 = vld [vmem:[#allocation2 + $0x30] sm:$0xff]
    %v512 = vld [vmem:[#allocation2 + $0x38] sm:$0xff]
    %v513 = vld [vmem:[#allocation2 + $0x40] sm:$0xff]
    %v514 = vld [vmem:[#allocation2 + $0x48] sm:$0xff]
    %v515 = vld [vmem:[#allocation2 + $0x50] sm:$0xff]
    %v516 = vld [vmem:[#allocation2 + $0x58] sm:$0xff]
    %v517 = vld [vmem:[#allocation2 + $0x60] sm:$0xff]
    %v518 = vld [vmem:[#allocation2 + $0x68] sm:$0xff]
    %v520 = vsel %vm136, %v509, 0
    %v523 = vsel %vm136, %v510, 0
    %525 = vmatprep.subr.mxu0 0.0
    %526 = vmatpush1.msra.mxu0 %v515
    %527 = vmatprep.subr.mxu0 0.0
    %528 = vmatpush1.msra.mxu0 %v516
    %529 = vmatprep.subr.mxu0 0.0
    %530 = vmatpush1.msra.mxu0 %v517
    %531 = vmatprep.subr.mxu0 0.0
    %532 = vmatpush1.msra.mxu0 %v518
    %533 = vmatprep.subr.mxu0 0.0
    %534 = vmatpush1.msra.mxu0 0.0
    %535 = vmatprep.subr.mxu0 0.0
    %536 = vmatpush1.msra.mxu0 0.0
    %537 = vmatprep.subr.mxu0 0.0
    %538 = vmatpush1.msra.mxu0 0.0
    %539 = vmatprep.subr.mxu0 0.0
    %540 = vmatpush1.msra.mxu0 0.0
    %541 = vmatprep.subr.mxu0 0.0
    %542 = vmatpush1.msra.mxu0 0.0
    %543 = vmatprep.subr.mxu0 0.0
    %544 = vmatpush1.msra.mxu0 0.0
    %545 = vmatprep.subr.mxu0 0.0
    %546 = vmatpush1.msra.mxu0 0.0
    %547 = vmatprep.subr.mxu0 0.0
    %548 = vmatpush1.msra.mxu0 0.0
    %549 = vmatprep.subr.mxu0 0.0
    %550 = vmatpush1.msra.mxu0 0.0
    %551 = vmatprep.subr.mxu0 0.0
    %552 = vmatpush1.msra.mxu0 0.0
    %553 = vmatprep.subr.mxu0 0.0
    %554 = vmatpush1.msra.mxu0 0.0
    %555 = vmatprep.subr.mxu0 0.0
    %556 = vmatpush1.msra.mxu0 0.0
    %557 = vmatprep.subr.mxu0 0.0
    %558 = vmatpush1.msra.mxu0 0.0
    %559 = vmatprep.subr.mxu0 0.0
    %560 = vmatpush1.msra.mxu0 0.0
    %561 = vmatprep.subr.mxu0 0.0
    %562 = vmatpush1.msra.mxu0 0.0
    %563 = vmatprep.subr.mxu0 0.0
    %564 = vmatpush1.msra.mxu0 0.0
    %565 = vmatprep.subr.mxu0 0.0
    %566 = vmatpush1.msra.mxu0 0.0
    %567 = vmatprep.subr.mxu0 0.0
    %568 = vmatpush1.msra.mxu0 0.0
    %569 = vmatprep.subr.mxu0 0.0
    %570 = vmatpush1.msra.mxu0 0.0
    %571 = vmatprep.subr.mxu0 0.0
    %572 = vmatpush1.msra.mxu0 0.0
    %573 = vmatprep.subr.mxu0 0.0
    %574 = vmatpush1.msra.mxu0 0.0
    %575 = vmatprep.subr.mxu0 0.0
    %576 = vmatpush1.msra.mxu0 0.0
    %577 = vmatprep.subr.mxu0 0.0
    %578 = vmatpush1.msra.mxu0 0.0
    %579 = vmatprep.subr.mxu0 0.0
    %580 = vmatpush1.msra.mxu0 0.0
    %581 = vmatprep.subr.mxu0 0.0
    %582 = vmatpush1.msra.mxu0 0.0
    %583 = vmatprep.subr.mxu0 0.0
    %584 = vmatpush1.msra.mxu0 0.0
    %585 = vmatprep.subr.mxu0 0.0
    %586 = vmatpush1.msra.mxu0 0.0
    %587 = vmatprep.subr.mxu0 0.0
    %588 = vmatpush1.msra.mxu0 0.0
    %589 = vmatprep.mubr.f32.mxu0 0.0
    %590 = vmatmul.mubr.f32.gmra.mrb[0].mxu0 %v520
    %v591 = vpop.f32.mrb[0].mxu0
    %v592 = vadd.f32 0.0, %v591
    %v593 = vpop.f32.mrb[0].mxu0
    %594 = vmatprep.mubr.f32.mxu0 0.0
    %595 = vmatmul.mubr.f32.gmra.mrb[0].mxu0 %v523
    %v596 = vpop.f32.mrb[0].mxu0
    %v597 = vadd.f32 0.0, %v596
    %v598 = vpop.f32.mrb[0].mxu0
    %599 = vdwg.mxu0
    %v601 = vsel %vm136, %v501, 0
    %v604 = vsel %vm136, %v502, 0
    %606 = vmatprep.subr.mxu0 0.0
    %607 = vmatpush1.msra.mxu0 %v511
    %608 = vmatprep.subr.mxu0 0.0
    %609 = vmatpush1.msra.mxu0 %v512
    %610 = vmatprep.subr.mxu0 0.0
    %611 = vmatpush1.msra.mxu0 %v513
    %612 = vmatprep.subr.mxu0 0.0
    %613 = vmatpush1.msra.mxu0 %v514
    %614 = vmatprep.subr.mxu0 0.0
    %615 = vmatpush1.msra.mxu0 0.0
    %616 = vmatprep.subr.mxu0 0.0
    %617 = vmatpush1.msra.mxu0 0.0
    %618 = vmatprep.subr.mxu0 0.0
    %619 = vmatpush1.msra.mxu0 0.0
    %620 = vmatprep.subr.mxu0 0.0
    %621 = vmatpush1.msra.mxu0 0.0
    %622 = vmatprep.subr.mxu0 0.0
    %623 = vmatpush1.msra.mxu0 0.0
    %624 = vmatprep.subr.mxu0 0.0
    %625 = vmatpush1.msra.mxu0 0.0
    %626 = vmatprep.subr.mxu0 0.0
    %627 = vmatpush1.msra.mxu0 0.0
    %628 = vmatprep.subr.mxu0 0.0
    %629 = vmatpush1.msra.mxu0 0.0
    %630 = vmatprep.subr.mxu0 0.0
    %631 = vmatpush1.msra.mxu0 0.0
    %632 = vmatprep.subr.mxu0 0.0
    %633 = vmatpush1.msra.mxu0 0.0
    %634 = vmatprep.subr.mxu0 0.0
    %635 = vmatpush1.msra.mxu0 0.0
    %636 = vmatprep.subr.mxu0 0.0
    %637 = vmatpush1.msra.mxu0 0.0
    %638 = vmatprep.subr.mxu0 0.0
    %639 = vmatpush1.msra.mxu0 0.0
    %640 = vmatprep.subr.mxu0 0.0
    %641 = vmatpush1.msra.mxu0 0.0
    %642 = vmatprep.subr.mxu0 0.0
    %643 = vmatpush1.msra.mxu0 0.0
    %644 = vmatprep.subr.mxu0 0.0
    %645 = vmatpush1.msra.mxu0 0.0
    %646 = vmatprep.subr.mxu0 0.0
    %647 = vmatpush1.msra.mxu0 0.0
    %648 = vmatprep.subr.mxu0 0.0
    %649 = vmatpush1.msra.mxu0 0.0
    %650 = vmatprep.subr.mxu0 0.0
    %651 = vmatpush1.msra.mxu0 0.0
    %652 = vmatprep.subr.mxu0 0.0
    %653 = vmatpush1.msra.mxu0 0.0
    %654 = vmatprep.subr.mxu0 0.0
    %655 = vmatpush1.msra.mxu0 0.0
    %656 = vmatprep.subr.mxu0 0.0
    %657 = vmatpush1.msra.mxu0 0.0
    %658 = vmatprep.subr.mxu0 0.0
    %659 = vmatpush1.msra.mxu0 0.0
    %660 = vmatprep.subr.mxu0 0.0
    %661 = vmatpush1.msra.mxu0 0.0
    %662 = vmatprep.subr.mxu0 0.0
    %663 = vmatpush1.msra.mxu0 0.0
    %664 = vmatprep.subr.mxu0 0.0
    %665 = vmatpush1.msra.mxu0 0.0
    %666 = vmatprep.subr.mxu0 0.0
    %667 = vmatpush1.msra.mxu0 0.0
    %668 = vmatprep.subr.mxu0 0.0
    %669 = vmatpush1.msra.mxu0 0.0
    %670 = vmatprep.mubr.f32.mxu0 0.0
    %671 = vmatmul.mubr.f32.gmra.mrb[0].mxu0 %v601
    %v672 = vpop.f32.mrb[0].mxu0
    %v673 = vadd.f32 %v592, %v672
    %v674 = vpop.f32.mrb[0].mxu0
    %675 = vmatprep.mubr.f32.mxu0 0.0
    %676 = vmatmul.mubr.f32.gmra.mrb[0].mxu0 %v604
    %v677 = vpop.f32.mrb[0].mxu0
    %v678 = vadd.f32 %v597, %v677
    %v679 = vpop.f32.mrb[0].mxu0
    %680 = vdwg.mxu0
    %v681 = vld [vmem:[#allocation2 + $0x70] sm:$0x1]
    %v682 = vld [vmem:[#allocation2 + $0x78] sm:$0x1]
    %v683 = vlaneseq
    %v684 = vshrl.u32 %v683, 7
    %v685 = vsub.s32 0, %v684
    %v686 = vrot.slane %v681, %v685
    %v687 = vmul.f32 %v673, %v686
    %v688 = vmul.f32 %v678, %v686
    %v689 = vsel %vm136, %v687, 0.0
    %690 = vadd.xlane.f32.xlu0 %v689
    %v691 = vpop.xlane.xlu0 %690
    %v692 = vsel %vm136, %v688, 0.0
    %693 = vadd.xlane.f32.xlu0 %v692
    %v694 = vpop.xlane.xlu0 %693
    %v695 = vlaneseq
    %v696 = vshrl.u32 %v695, 7
    %v697 = vsub.s32 0, %v696
    %v698 = vrot.slane %v682, %v697
    %v699 = vmul.f32 %v673, %v698
    %v700 = vmul.f32 %v678, %v698
    %v701 = vsel %vm136, %v699, 0.0
    %702 = vadd.xlane.f32.xlu0 %v701
    %v703 = vpop.xlane.xlu0 %702
    %v704 = vsel %vm136, %v700, 0.0
    %705 = vadd.xlane.f32.xlu0 %v704
    %v706 = vpop.xlane.xlu0 %705
    %v709 = vlaneseq
    %v710 = vshrl.u32 %v709, 7
    %v711 = vsub.s32 %v158, %v710
    %v712 = vrot.slane %v691, %v711
    %v713 = vlaneseq
    %v714 = vshrl.u32 %v713, 7
    %v715 = vsub.s32 %v163, %v714
    %v716 = vrot.slane %v694, %v715
    %v717 = vsel %vm168, %v716, %v712
    %v718 = vsel %vm170, %v717, %v717
    %v719 = vsel %vm172, %v717, %v718
    %v720 = vsel %vm174, %v717, %v719
    %v721 = vsel %vm176, %v717, %v720
    %v722 = vsel %vm178, %v717, %v721
    %v723 = vsel %vm180, %v717, %v722
    %v725 = vadd.f32 %v703, %v723
    %v726 = vadd.f32 %v706, %v723
    %vm727 = vcmp.ge.f32.partialorder %v725, 0.0
    %vm728 = vcmp.ge.f32.partialorder %v726, 0.0
    %v729 = vmul.f32 %v725, 0.2
    %v730 = vmul.f32 %v726, 0.2
    %v731 = vsel %vm727, %v725, %v729
    %v732 = vsel %vm728, %v726, %v730
    %v733 = vsel %vm43, %v731, -1e+30
    %v734 = vsel %vm44, %v732, -1e+30
    %v735 = vsel %vm193, %v733, -inf
    %736 = vmax.xlane.f32.xlu0 %v735
    %v737 = vpop.xlane.xlu0 %736
    %v738 = vsel %vm193, %v734, -inf
    %739 = vmax.xlane.f32.xlu0 %v738
    %v740 = vpop.xlane.xlu0 %739
    %v741 = vsub.f32 %v733, %v737
    %v742 = vsub.f32 %v734, %v740
    %v743 = vmul.f32 %v741, 1.442695
    %v744 = vpow.pop %v743
    %v745 = vmul.f32 %v742, 1.442695
    %v746 = vpow.pop %v745
    %v747 = vsel %vm193, %v744, 0.0
    %748 = vadd.xlane.f32.xlu0 %v747
    %v749 = vpop.xlane.xlu0 %748
    %v750 = vsel %vm193, %v746, 0.0
    %751 = vadd.xlane.f32.xlu0 %v750
    %v752 = vpop.xlane.xlu0 %751
    %v754 = vsel %vm193, %v744, 0
    %v757 = vsel %vm193, %v746, 0
    %759 = vmatprep.subr.mxu0 0.0
    %760 = vmatpush1.msra.mxu0 %v673
    %761 = vmatprep.subr.mxu0 0.0
    %762 = vmatpush1.msra.mxu0 %v678
    %763 = vmatprep.subr.mxu0 0.0
    %764 = vmatpush1.msra.mxu0 0.0
    %765 = vmatprep.subr.mxu0 0.0
    %766 = vmatpush1.msra.mxu0 0.0
    %767 = vmatprep.subr.mxu0 0.0
    %768 = vmatpush1.msra.mxu0 0.0
    %769 = vmatprep.subr.mxu0 0.0
    %770 = vmatpush1.msra.mxu0 0.0
    %771 = vmatprep.subr.mxu0 0.0
    %772 = vmatpush1.msra.mxu0 0.0
    %773 = vmatprep.subr.mxu0 0.0
    %774 = vmatpush1.msra.mxu0 0.0
    %775 = vmatprep.subr.mxu0 0.0
    %776 = vmatpush1.msra.mxu0 0.0
    %777 = vmatprep.subr.mxu0 0.0
    %778 = vmatpush1.msra.mxu0 0.0
    %779 = vmatprep.subr.mxu0 0.0
    %780 = vmatpush1.msra.mxu0 0.0
    %781 = vmatprep.subr.mxu0 0.0
    %782 = vmatpush1.msra.mxu0 0.0
    %783 = vmatprep.subr.mxu0 0.0
    %784 = vmatpush1.msra.mxu0 0.0
    %785 = vmatprep.subr.mxu0 0.0
    %786 = vmatpush1.msra.mxu0 0.0
    %787 = vmatprep.subr.mxu0 0.0
    %788 = vmatpush1.msra.mxu0 0.0
    %789 = vmatprep.subr.mxu0 0.0
    %790 = vmatpush1.msra.mxu0 0.0
    %791 = vmatprep.subr.mxu0 0.0
    %792 = vmatpush1.msra.mxu0 0.0
    %793 = vmatprep.subr.mxu0 0.0
    %794 = vmatpush1.msra.mxu0 0.0
    %795 = vmatprep.subr.mxu0 0.0
    %796 = vmatpush1.msra.mxu0 0.0
    %797 = vmatprep.subr.mxu0 0.0
    %798 = vmatpush1.msra.mxu0 0.0
    %799 = vmatprep.subr.mxu0 0.0
    %800 = vmatpush1.msra.mxu0 0.0
    %801 = vmatprep.subr.mxu0 0.0
    %802 = vmatpush1.msra.mxu0 0.0
    %803 = vmatprep.subr.mxu0 0.0
    %804 = vmatpush1.msra.mxu0 0.0
    %805 = vmatprep.subr.mxu0 0.0
    %806 = vmatpush1.msra.mxu0 0.0
    %807 = vmatprep.subr.mxu0 0.0
    %808 = vmatpush1.msra.mxu0 0.0
    %809 = vmatprep.subr.mxu0 0.0
    %810 = vmatpush1.msra.mxu0 0.0
    %811 = vmatprep.subr.mxu0 0.0
    %812 = vmatpush1.msra.mxu0 0.0
    %813 = vmatprep.subr.mxu0 0.0
    %814 = vmatpush1.msra.mxu0 0.0
    %815 = vmatprep.subr.mxu0 0.0
    %816 = vmatpush1.msra.mxu0 0.0
    %817 = vmatprep.subr.mxu0 0.0
    %818 = vmatpush1.msra.mxu0 0.0
    %819 = vmatprep.subr.mxu0 0.0
    %820 = vmatpush1.msra.mxu0 0.0
    %821 = vmatprep.subr.mxu0 0.0
    %822 = vmatpush1.msra.mxu0 0.0
    %823 = vmatprep.mubr.f32.mxu0 0.0
    %824 = vmatmul.mubr.f32.gmra.mrb[0].mxu0 %v754
    %v825 = vpop.f32.mrb[0].mxu0
    %v826 = vadd.f32 0.0, %v825
    %v827 = vpop.f32.mrb[0].mxu0
    %828 = vmatprep.mubr.f32.mxu0 0.0
    %829 = vmatmul.mubr.f32.gmra.mrb[0].mxu0 %v757
    %v830 = vpop.f32.mrb[0].mxu0
    %v831 = vadd.f32 0.0, %v830
    %v832 = vpop.f32.mrb[0].mxu0
    %833 = vdwg.mxu0
    %v834 = vadd.f32 %v749, 1e-16
    %v835 = vadd.f32 %v752, 1e-16
    %v836 = vrcp.pop %v834
    %v837 = vmul.f32 1.0, %v836
    %v838 = vrcp.pop %v835
    %v839 = vmul.f32 1.0, %v838
    %v840 = vmul.f32 %v826, %v837
    %v841 = vmul.f32 %v831, %v839
    %v842 = vld [vmem:[#allocation2 + $0x80] sm:$0x1]
    %v843 = vlaneseq
    %v844 = vshrl.u32 %v843, 7
    %v845 = vsub.s32 0, %v844
    %v846 = vrot.slane %v842, %v845
    %v847 = vadd.f32 %v840, %v846
    %v848 = vadd.f32 %v841, %v846
    %v849 = vmax.f32 %v847, 0.0
    %v850 = vmax.f32 %v848, 0.0
    %v851 = vld [vmem:[#allocation2 + $0x88] sm:$0xff]
    %v852 = vld [vmem:[#allocation2 + $0x90] sm:$0xff]
    %v853 = vld [vmem:[#allocation2 + $0x98] sm:$0xff]
    %v854 = vld [vmem:[#allocation2 + $0xa0] sm:$0xff]
    %v855 = vld [vmem:[#allocation2 + $0xa8] sm:$0x1]
    %v856 = vlaneseq
    %v857 = vshrl.u32 %v856, 7
    %v858 = vsub.s32 0, %v857
    %v859 = vrot.slane %v855, %v858
    %v861 = vsel %vm136, %v849, 0
    %v864 = vsel %vm136, %v850, 0
    %866 = vmatprep.subr.mxu0 0.0
    %867 = vmatpush1.msra.mxu0 %v851
    %868 = vmatprep.subr.mxu0 0.0
    %869 = vmatpush1.msra.mxu0 %v852
    %870 = vmatprep.subr.mxu0 0.0
    %871 = vmatpush1.msra.mxu0 %v853
    %872 = vmatprep.subr.mxu0 0.0
    %873 = vmatpush1.msra.mxu0 %v854
    %874 = vmatprep.subr.mxu0 0.0
    %875 = vmatpush1.msra.mxu0 0.0
    %876 = vmatprep.subr.mxu0 0.0
    %877 = vmatpush1.msra.mxu0 0.0
    %878 = vmatprep.subr.mxu0 0.0
    %879 = vmatpush1.msra.mxu0 0.0
    %880 = vmatprep.subr.mxu0 0.0
    %881 = vmatpush1.msra.mxu0 0.0
    %882 = vmatprep.subr.mxu0 0.0
    %883 = vmatpush1.msra.mxu0 0.0
    %884 = vmatprep.subr.mxu0 0.0
    %885 = vmatpush1.msra.mxu0 0.0
    %886 = vmatprep.subr.mxu0 0.0
    %887 = vmatpush1.msra.mxu0 0.0
    %888 = vmatprep.subr.mxu0 0.0
    %889 = vmatpush1.msra.mxu0 0.0
    %890 = vmatprep.subr.mxu0 0.0
    %891 = vmatpush1.msra.mxu0 0.0
    %892 = vmatprep.subr.mxu0 0.0
    %893 = vmatpush1.msra.mxu0 0.0
    %894 = vmatprep.subr.mxu0 0.0
    %895 = vmatpush1.msra.mxu0 0.0
    %896 = vmatprep.subr.mxu0 0.0
    %897 = vmatpush1.msra.mxu0 0.0
    %898 = vmatprep.subr.mxu0 0.0
    %899 = vmatpush1.msra.mxu0 0.0
    %900 = vmatprep.subr.mxu0 0.0
    %901 = vmatpush1.msra.mxu0 0.0
    %902 = vmatprep.subr.mxu0 0.0
    %903 = vmatpush1.msra.mxu0 0.0
    %904 = vmatprep.subr.mxu0 0.0
    %905 = vmatpush1.msra.mxu0 0.0
    %906 = vmatprep.subr.mxu0 0.0
    %907 = vmatpush1.msra.mxu0 0.0
    %908 = vmatprep.subr.mxu0 0.0
    %909 = vmatpush1.msra.mxu0 0.0
    %910 = vmatprep.subr.mxu0 0.0
    %911 = vmatpush1.msra.mxu0 0.0
    %912 = vmatprep.subr.mxu0 0.0
    %913 = vmatpush1.msra.mxu0 0.0
    %914 = vmatprep.subr.mxu0 0.0
    %915 = vmatpush1.msra.mxu0 0.0
    %916 = vmatprep.subr.mxu0 0.0
    %917 = vmatpush1.msra.mxu0 0.0
    %918 = vmatprep.subr.mxu0 0.0
    %919 = vmatpush1.msra.mxu0 0.0
    %920 = vmatprep.subr.mxu0 0.0
    %921 = vmatpush1.msra.mxu0 0.0
    %922 = vmatprep.subr.mxu0 0.0
    %923 = vmatpush1.msra.mxu0 0.0
    %924 = vmatprep.subr.mxu0 0.0
    %925 = vmatpush1.msra.mxu0 0.0
    %926 = vmatprep.subr.mxu0 0.0
    %927 = vmatpush1.msra.mxu0 0.0
    %928 = vmatprep.subr.mxu0 0.0
    %929 = vmatpush1.msra.mxu0 0.0
    %930 = vmatprep.mubr.f32.mxu0 0.0
    %931 = vmatmul.mubr.f32.gmra.mrb[0].mxu0 %v861
    %v932 = vpop.f32.mrb[0].mxu0
    %v933 = vadd.f32 %v859, %v932
    %v934 = vpop.f32.mrb[0].mxu0
    %935 = vmatprep.mubr.f32.mxu0 0.0
    %936 = vmatmul.mubr.f32.gmra.mrb[0].mxu0 %v864
    %v937 = vpop.f32.mrb[0].mxu0
    %v938 = vadd.f32 %v859, %v937
    %v939 = vpop.f32.mrb[0].mxu0
    %940 = vdwg.mxu0
    %v941 = vmax.f32 %v933, 0.0
    %v942 = vmax.f32 %v938, 0.0
    %v943 = vld [vmem:[#allocation2 + $0xb0] sm:$0xff]
    %v944 = vld [vmem:[#allocation2 + $0xb8] sm:$0xff]
    %v945 = vld [vmem:[#allocation2 + $0xc0] sm:$0xff]
    %v946 = vld [vmem:[#allocation2 + $0xc8] sm:$0xff]
    %v947 = vld [vmem:[#allocation2 + $0xd0] sm:$0x1]
    %v948 = vlaneseq
    %v949 = vshrl.u32 %v948, 7
    %v950 = vsub.s32 0, %v949
    %v951 = vrot.slane %v947, %v950
    %v953 = vsel %vm136, %v941, 0
    %v956 = vsel %vm136, %v942, 0
    %958 = vmatprep.subr.mxu0 0.0
    %959 = vmatpush1.msra.mxu0 %v943
    %960 = vmatprep.subr.mxu0 0.0
    %961 = vmatpush1.msra.mxu0 %v944
    %962 = vmatprep.subr.mxu0 0.0
    %963 = vmatpush1.msra.mxu0 %v945
    %964 = vmatprep.subr.mxu0 0.0
    %965 = vmatpush1.msra.mxu0 %v946
    %966 = vmatprep.subr.mxu0 0.0
    %967 = vmatpush1.msra.mxu0 0.0
    %968 = vmatprep.subr.mxu0 0.0
    %969 = vmatpush1.msra.mxu0 0.0
    %970 = vmatprep.subr.mxu0 0.0
    %971 = vmatpush1.msra.mxu0 0.0
    %972 = vmatprep.subr.mxu0 0.0
    %973 = vmatpush1.msra.mxu0 0.0
    %974 = vmatprep.subr.mxu0 0.0
    %975 = vmatpush1.msra.mxu0 0.0
    %976 = vmatprep.subr.mxu0 0.0
    %977 = vmatpush1.msra.mxu0 0.0
    %978 = vmatprep.subr.mxu0 0.0
    %979 = vmatpush1.msra.mxu0 0.0
    %980 = vmatprep.subr.mxu0 0.0
    %981 = vmatpush1.msra.mxu0 0.0
    %982 = vmatprep.subr.mxu0 0.0
    %983 = vmatpush1.msra.mxu0 0.0
    %984 = vmatprep.subr.mxu0 0.0
    %985 = vmatpush1.msra.mxu0 0.0
    %986 = vmatprep.subr.mxu0 0.0
    %987 = vmatpush1.msra.mxu0 0.0
    %988 = vmatprep.subr.mxu0 0.0
    %989 = vmatpush1.msra.mxu0 0.0
    %990 = vmatprep.subr.mxu0 0.0
    %991 = vmatpush1.msra.mxu0 0.0
    %992 = vmatprep.subr.mxu0 0.0
    %993 = vmatpush1.msra.mxu0 0.0
    %994 = vmatprep.subr.mxu0 0.0
    %995 = vmatpush1.msra.mxu0 0.0
    %996 = vmatprep.subr.mxu0 0.0
    %997 = vmatpush1.msra.mxu0 0.0
    %998 = vmatprep.subr.mxu0 0.0
    %999 = vmatpush1.msra.mxu0 0.0
    %1000 = vmatprep.subr.mxu0 0.0
    %1001 = vmatpush1.msra.mxu0 0.0
    %1002 = vmatprep.subr.mxu0 0.0
    %1003 = vmatpush1.msra.mxu0 0.0
    %1004 = vmatprep.subr.mxu0 0.0
    %1005 = vmatpush1.msra.mxu0 0.0
    %1006 = vmatprep.subr.mxu0 0.0
    %1007 = vmatpush1.msra.mxu0 0.0
    %1008 = vmatprep.subr.mxu0 0.0
    %1009 = vmatpush1.msra.mxu0 0.0
    %1010 = vmatprep.subr.mxu0 0.0
    %1011 = vmatpush1.msra.mxu0 0.0
    %1012 = vmatprep.subr.mxu0 0.0
    %1013 = vmatpush1.msra.mxu0 0.0
    %1014 = vmatprep.subr.mxu0 0.0
    %1015 = vmatpush1.msra.mxu0 0.0
    %1016 = vmatprep.subr.mxu0 0.0
    %1017 = vmatpush1.msra.mxu0 0.0
    %1018 = vmatprep.subr.mxu0 0.0
    %1019 = vmatpush1.msra.mxu0 0.0
    %1020 = vmatprep.subr.mxu0 0.0
    %1021 = vmatpush1.msra.mxu0 0.0
    %1022 = vmatprep.mubr.f32.mxu0 0.0
    %1023 = vmatmul.mubr.f32.gmra.mrb[0].mxu0 %v953
    %v1024 = vpop.f32.mrb[0].mxu0
    %v1025 = vadd.f32 %v951, %v1024
    %v1026 = vpop.f32.mrb[0].mxu0
    %1027 = vmatprep.mubr.f32.mxu0 0.0
    %1028 = vmatmul.mubr.f32.gmra.mrb[0].mxu0 %v956
    %v1029 = vpop.f32.mrb[0].mxu0
    %v1030 = vadd.f32 %v951, %v1029
    %v1031 = vpop.f32.mrb[0].mxu0
    %1032 = vdwg.mxu0
    %1033 = vst [vmem:[#allocation5] sm:$0xff] %v1025
    %1034 = vst [vmem:[#allocation5 + $0x8] sm:$0xff] %v1030
    %v1035 = vld [vmem:[%s2] sm:$0x3]
    %v1036 = vld [vmem:[#allocation2 + $0xd8] sm:$0x3]
    %v1037 = vld [vmem:[#allocation2 + $0xe0] sm:$0x1]
    %1039 = vset.pattern.permute.xlu0 0
    %1040 = vperm.xlu0 %1039, %v1036
    %v1041 = vpop.permute.xlu0 %1040
    %v1043 = vmul.f32 %v1035, %v1041
    %vm1044 = vcmask 1041408
    %v1045 = vsel %vm1044, %v1043, 0.0
    %v1046 = vrot.slane %v1045, 4
    %v1047 = vadd.f32 %v1045, %v1046
    %v1048 = vrot.slane %v1047, 2
    %v1049 = vadd.f32 %v1047, %v1048
    %v1050 = vrot.slane %v1049, 1
    %v1051 = vadd.f32 %v1049, %v1050
    %1053 = vset.pattern.permute.xlu0 0
    %1054 = vperm.xlu0 %1053, %v1037
    %v1055 = vpop.permute.xlu0 %1054
    %v1057 = vadd.f32 %v1051, %v1055
    %v1058 = vsub.f32 0.0, %v1057
    %v1059 = vmul.f32 %v1058, 1.442695
    %v1060 = vpow.pop %v1059
    %v1061 = vadd.f32 %v1060, 1.0
    %v1062 = vrcp.pop %v1061
    %v1063 = vmul.f32 1.0, %v1062
    %1064 = vst [vmem:[#allocation6] sm:$0x1] %v1063
    // Predicated region
    $region22: #{tpu_custom_call.1} parent=1 // pred_check
      _
    $region23: #{tpu_custom_call.1} parent=1 // pred_check_branch
      %1066 = sbr.rel (0) target = $region25
    $region24: #{tpu_custom_call.1} parent=1 // pred_region
      %s1068 = ssub.s32 256, 256
      %1069 = vsyncadd [#allocation4], %s1068
      %s1070 = sshll.u32 [#allocation5], 4
      %s1071 = int_to_ptr.vmem [resolvable:$true] %s1070
      %1076 = dma.vmem_to_hbm [thread:$0]  %s1071, 256, %s4, [#allocation4], 128, 128, 8
    $region25: #{tpu_custom_call.1} parent=1 // pred_fallthru
      _
    // Predicated region
    $region26: #{tpu_custom_call.1} parent=1 // pred_check
      _
    $region27: #{tpu_custom_call.1} parent=1 // pred_check_branch
      %1078 = sbr.rel (0) target = $region29
    $region28: #{tpu_custom_call.1} parent=1 // pred_region
      %s1080 = ssub.s32 16, 16
      %1081 = vsyncadd [#allocation7], %s1080
      %s1083 = sshll.u32 [#allocation6], 4
      %s1084 = int_to_ptr.vmem [resolvable:$true] %s1083
      %1086 = dma.vmem_to_hbm [thread:$0]  %s1084, 16, %s5, [#allocation7]
    $region29: #{tpu_custom_call.1} parent=1 // pred_fallthru
      _
    // Predicated region
    $region30: #{tpu_custom_call.1} parent=1 // pred_check
      _
    $region31: #{tpu_custom_call.1} parent=1 // pred_check_branch
      %1088 = sbr.rel (0) target = $region33
    $region32: #{tpu_custom_call.1} parent=1 // pred_region
      %1089 = dma.done [#allocation4], 256
    $region33: #{tpu_custom_call.1} parent=1 // pred_fallthru
      _
    // Predicated region
    $region34: #{tpu_custom_call.1} parent=1 // pred_check
      _
    $region35: #{tpu_custom_call.1} parent=1 // pred_check_branch
      %1091 = sbr.rel (0) target = $region37
    $region36: #{tpu_custom_call.1} parent=1 // pred_region
      %1092 = dma.done [#allocation7], 16
    $region37: #{tpu_custom_call.1} parent=1 // pred_fallthru
      _
    %1093 = vsyncpa [#allocation3], 1
    %1094 = vsyncpa [#allocation4], 1
    %1095 = vsyncpa [#allocation7], 1

</llo_original>
